<compile_context>
chip_gen: v5e
topology: v5e:2x2
jax: 0.10.0
libtpu: 0.0.40
codegen_flags: <defaults>
</compile_context>

<pallas_src>
import functools

import jax
import jax.numpy as jnp
import numpy as np
from jax.experimental import pallas as pl
from jax.experimental.pallas import tpu as pltpu


def _attention_pool_kernel(b_ref, w_ref, x_ref, pooled_ref, mask_ref, *, hw_valid):
    # b_ref:      SMEM (1,)          1x1-conv bias (scalar, f32)
    # w_ref:      VMEM (C, 1)        1x1-conv weight (f32), one sublane row per channel
    # x_ref:      VMEM (Bt, C, HWp)  batch block of x, native dtype
    # pooled_ref: VMEM (Bt, C)       attention-pooled features
    # mask_ref:   VMEM (Bt, HWp)     softmax attention mask (lane-dense 2-D slab)
    x = x_ref[...].astype(jnp.float32)              # upcast in-kernel (bf16 streams at half traffic)
    w = w_ref[...]                                  # (C, 1): broadcasts over lanes

    # 1x1 conv over channels on the VPU: logits[b, hw] = sum_c w[c] * x[b, c, hw] + bias
    logits = jnp.sum(x * w, axis=1) + b_ref[0]      # (Bt, HWp)

    hwp = logits.shape[-1]
    if hwp != hw_valid:                             # compile-time: only when HW was lane-padded
        lane = jax.lax.broadcasted_iota(jnp.int32, logits.shape, 1)
        logits = jnp.where(lane < hw_valid, logits, jnp.float32(-1e30))

    # numerically-stable softmax over the flattened spatial axis
    m = jnp.max(logits, axis=-1, keepdims=True)     # (Bt, 1)
    e = jnp.exp(logits - m)                         # (Bt, HWp)
    s = jnp.sum(e, axis=-1, keepdims=True)          # (Bt, 1)
    inv = pl.reciprocal(s, approx=True)             # EUP slot (off the VPU divide path)
    inv = inv * (2.0 - s * inv)                     # one Newton step -> ~f32 accurate
    probs = e * inv                                 # (Bt, HWp)

    mask_ref[...] = probs.astype(mask_ref.dtype)

    # weighted spatial sum per channel; padded lanes contribute 0 (x==0, probs==0)
    pooled = jnp.sum(x * probs[:, None, :], axis=-1)    # (Bt, C)
    pooled_ref[...] = pooled.astype(pooled_ref.dtype)


def _round_up(v, m):
    return ((v + m - 1) // m) * m


def _tpu_tiling_params():
    """(min grid blocks, target x-block bytes, vmem_limit_bytes) per TPU generation."""
    kind = ""
    try:
        kind = jax.devices()[0].device_kind.lower()
    except Exception:
        pass
    if "v7" in kind:      # 2 TensorCores/chip, only 64 MiB physical VMEM: tile tighter, split batch
        return 2, 4 << 20, 48 << 20
    if "v6" in kind:      # 128 MiB VMEM: bigger blocks push toward the HBM roofline
        return 1, 8 << 20, 96 << 20
    if "v5" in kind:      # v5e: small default scoped VMEM; raise it, keep blocks modest
        return 1, 2 << 20, 64 << 20
    return 1, 4 << 20, 48 << 20


def _pick_batch_block(B, per_b_bytes, target_bytes, min_blocks):
    """Batch elements per grid step.

    Returns either the full batch (block == full array -> always BlockSpec-legal)
    or a multiple of 8 (dense sublanes for the (Bt, C) / (Bt, HWp) output blocks).
    With min_blocks=2 (v7x) the block is capped so the grid has >= 2 parallel
    steps and both TensorCores get work.
    """
    bt = max(1, target_bytes // max(1, per_b_bytes))
    if min_blocks > 1 and B > 1:
        bt = min(bt, _round_up(-(-B // min_blocks), 8))
    if bt >= B:
        return B
    return max(8, (bt // 8) * 8)


def attention_pool_2d(x, weight, bias, *, keepdim=True, return_masks=True):
    """x: (B, C, H, W) (any float dtype); weight: (C,) 1x1-conv weight; bias: scalar."""
    B, C, H, W = x.shape
    HW = H * W
    HWp = _round_up(HW, 128)                 # lane-dense spatial axis
    dtype = x.dtype

    x_flat = x.reshape(B, C, HW)             # keep native dtype; upcast happens in-kernel
    w2 = weight.reshape(C, 1).astype(jnp.float32)
    b1 = jnp.asarray(bias, jnp.float32).reshape(1)

    min_blocks, target_bytes, vmem_limit = _tpu_tiling_params()

    # VMEM footprint of one batch element's (C, HWp) slab, counting the sublane
    # padding when C < 8 (each (8,128) tile is only C/8 full).
    itemsize = jnp.dtype(dtype).itemsize
    per_b_bytes = _round_up(C, 8) * HWp * itemsize

    Bt = _pick_batch_block(B, per_b_bytes, target_bytes, min_blocks)
    nb = -(-B // Bt)
    Bp = nb * Bt

    if Bp != B or HWp != HW:
        x_flat = jnp.pad(x_flat, ((0, Bp - B), (0, 0), (0, HWp - HW)))

    # TODO(synk): if a single (C, HWp) slab ever exceeds the VMEM budget, tile the
    # HW axis with an inner "arbitrary" grid axis + online-softmax accumulators.

    kernel = functools.partial(_attention_pool_kernel, hw_valid=HW)

    pooled, mask = pl.pallas_call(
        kernel,
        out_shape=(
            jax.ShapeDtypeStruct((Bp, C), dtype),
            jax.ShapeDtypeStruct((Bp, HWp), dtype),
        ),
        grid_spec=pltpu.PrefetchScalarGridSpec(
            num_scalar_prefetch=0,
            grid=(nb,),
            in_specs=[
                pl.BlockSpec(memory_space=pltpu.MemorySpace.SMEM),   # bias scalar
                pl.BlockSpec((C, 1), lambda i: (0, 0)),              # weight (shared)
                pl.BlockSpec((Bt, C, HWp), lambda i: (i, 0, 0)),     # x batch block
            ],
            out_specs=[
                pl.BlockSpec((Bt, C), lambda i: (i, 0)),             # pooled
                pl.BlockSpec((Bt, HWp), lambda i: (i, 0)),           # softmax mask (2-D, lane-dense)
            ],
        ),
        compiler_params=pltpu.CompilerParams(
            dimension_semantics=("parallel",),    # shards batch blocks across TCs on v7x
            vmem_limit_bytes=vmem_limit,
        ),
    )(b1, w2, x_flat)

    pooled = pooled[:B]
    mask = mask[:B, :HW]

    pooled_out = pooled.reshape(B, C, 1, 1) if keepdim else pooled
    mask_out = mask.reshape(B, 1, H, W)

    if return_masks:
        return pooled_out, mask_out
    return pooled_out


def _reference(x, weight, bias, keepdim=True):
    # pure-JAX reference of the PyTorch forward (f32 math)
    B, C, H, W = x.shape
    xf = x.astype(jnp.float32)
    logits = jnp.einsum("bchw,c->bhw", xf, weight.astype(jnp.float32)) + bias
    logits = logits.reshape(B, H * W)
    probs = jax.nn.softmax(logits, axis=-1).reshape(B, 1, H, W)
    pooled = jnp.sum(xf * probs, axis=(2, 3), keepdims=keepdim)
    return pooled, probs


if __name__ == "__main__":
    key = jax.random.PRNGKey(0)
    k_x, k_w, k_b = jax.random.split(key, 3)

    B, C, H, W = 2, 4, 16, 16
    x = jax.random.normal(k_x, (B, C, H, W), dtype=jnp.float32)
    # Conv2d(C, 1, 1) parameters: weight (1, C, 1, 1) -> (C,), bias (1,) -> scalar
    weight = jax.random.normal(k_w, (C,), dtype=jnp.float32) * 0.1
    bias = jax.random.normal(k_b, (), dtype=jnp.float32) * 0.1

    pooled, mask = attention_pool_2d(x, weight, bias, keepdim=True, return_masks=True)
    jax.block_until_ready((pooled, mask))

    ref_pooled, ref_mask = _reference(x, weight, bias, keepdim=True)
    assert np.allclose(np.asarray(pooled), np.asarray(ref_pooled), atol=1e-5, rtol=1e-5)
    assert np.allclose(np.asarray(mask), np.asarray(ref_mask), atol=1e-5, rtol=1e-5)

    # Also exercise the HW % 128 != 0 (lane-padded + -inf masked) path once.
    x7 = jax.random.normal(k_x, (B, C, 7, 7), dtype=jnp.float32)
    p7, m7 = attention_pool_2d(x7, weight, bias, keepdim=True, return_masks=True)
    jax.block_until_ready((p7, m7))
    rp7, rm7 = _reference(x7, weight, bias, keepdim=True)
    assert np.allclose(np.asarray(p7), np.asarray(rp7), atol=1e-5, rtol=1e-5)
    assert np.allclose(np.asarray(m7), np.asarray(rm7), atol=1e-5, rtol=1e-5)

    print("KERNEL_OK")
</pallas_src>

<mosaic_0001>
module attributes {stable_mosaic.version = 11 : i64} {
  func.func @_attention_pool_kernel(%arg0: i32, %arg1: memref<1xf32, #tpu.memory_space<smem>>, %arg2: memref<4x1xf32, #tpu.memory_space<vmem>>, %arg3: memref<2x4x256xf32, #tpu.memory_space<vmem>>, %arg4: memref<2x4xf32, #tpu.memory_space<vmem>>, %arg5: memref<2x256xf32, #tpu.memory_space<vmem>>) attributes {dimension_semantics = [#tpu.dimension_semantics<parallel>], iteration_bounds = array<i64: 1>, scalar_prefetch = 0 : i64, scratch_operands = 0 : i64, tpu.core_type = #tpu.core_type<tc>, window_params = [{transform_indices = @transform_0, window_bounds = array<i64: 1>}, {pipeline_mode = #tpu.pipeline_mode<synchronous>, transform_indices = @transform_1, window_bounds = array<i64: 4, 1>}, {transform_indices = @transform_2, window_bounds = array<i64: 2, 4, 256>}, {transform_indices = @transform_3, window_bounds = array<i64: 2, 4>}, {transform_indices = @transform_4, window_bounds = array<i64: 2, 256>}]} {
    %c0 = arith.constant 0 : index
    %c0_0 = arith.constant 0 : index
    %c0_1 = arith.constant 0 : index
    %0 = vector.load %arg3[%c0, %c0_0, %c0_1] : memref<2x4x256xf32, #tpu.memory_space<vmem>>, vector<2x4x256xf32>
    %c0_2 = arith.constant 0 : index
    %c0_3 = arith.constant 0 : index
    %1 = vector.load %arg2[%c0_2, %c0_3] : memref<4x1xf32, #tpu.memory_space<vmem>>, vector<4x1xf32>
    %2 = vector.shape_cast %1 : vector<4x1xf32> to vector<1x4x1xf32>
    %3 = vector.broadcast %2 : vector<1x4x1xf32> to vector<2x4x256xf32>
    %4 = arith.mulf %0, %3 : vector<2x4x256xf32>
    %cst = arith.constant dense<0.000000e+00> : vector<2x256xf32>
    %5 = vector.multi_reduction <add>, %4, %cst [1] : vector<2x4x256xf32> to vector<2x256xf32>
    %c0_4 = arith.constant 0 : index
    %6 = memref.load %arg1[%c0_4] : memref<1xf32, #tpu.memory_space<smem>>
    %7 = vector.broadcast %6 : f32 to vector<2x256xf32>
    %8 = arith.addf %5, %7 : vector<2x256xf32>
    %cst_5 = arith.constant dense<0xFF800000> : vector<2xf32>
    %9 = vector.multi_reduction <maximumf>, %8, %cst_5 [1] : vector<2x256xf32> to vector<2xf32>
    %10 = vector.shape_cast %9 : vector<2xf32> to vector<2x1xf32>
    %11 = vector.broadcast %10 : vector<2x1xf32> to vector<2x256xf32>
    %12 = arith.subf %8, %11 : vector<2x256xf32>
    %13 = math.exp %12 : vector<2x256xf32>
    %cst_6 = arith.constant dense<0.000000e+00> : vector<2xf32>
    %14 = vector.multi_reduction <add>, %13, %cst_6 [1] : vector<2x256xf32> to vector<2xf32>
    %15 = vector.shape_cast %14 : vector<2xf32> to vector<2x1xf32>
    %16 = tpu.reciprocal %15 {approx = true} : vector<2x1xf32> -> vector<2x1xf32>
    %17 = arith.mulf %15, %16 : vector<2x1xf32>
    %cst_7 = arith.constant 2.000000e+00 : f32
    %18 = vector.broadcast %cst_7 : f32 to vector<2x1xf32>
    %19 = arith.subf %18, %17 : vector<2x1xf32>
    %20 = arith.mulf %16, %19 : vector<2x1xf32>
    %21 = vector.broadcast %20 : vector<2x1xf32> to vector<2x256xf32>
    %22 = arith.mulf %13, %21 : vector<2x256xf32>
    %c0_8 = arith.constant 0 : index
    %c0_9 = arith.constant 0 : index
    %23 = vector.load %arg5[%c0_8, %c0_9] : memref<2x256xf32, #tpu.memory_space<vmem>>, vector<2x256xf32>
    tpu.vector_store %arg5[%c0_8, %c0_9], %22 {strides = array<i32>} : memref<2x256xf32, #tpu.memory_space<vmem>>, vector<2x256xf32>,
    %24 = vector.shape_cast %22 : vector<2x256xf32> to vector<2x1x256xf32>
    %25 = vector.broadcast %24 : vector<2x1x256xf32> to vector<2x4x256xf32>
    %26 = arith.mulf %0, %25 : vector<2x4x256xf32>
    %cst_10 = arith.constant dense<0.000000e+00> : vector<2x4xf32>
    %27 = vector.multi_reduction <add>, %26, %cst_10 [2] : vector<2x4x256xf32> to vector<2x4xf32>
    %c0_11 = arith.constant 0 : index
    %c0_12 = arith.constant 0 : index
    %28 = vector.load %arg4[%c0_11, %c0_12] : memref<2x4xf32, #tpu.memory_space<vmem>>, vector<2x4xf32>
    tpu.vector_store %arg4[%c0_11, %c0_12], %27 {strides = array<i32>} : memref<2x4xf32, #tpu.memory_space<vmem>>, vector<2x4xf32>,
    return
  }
  func.func @transform_0(%arg0: i32) -> i32 {
    %c0_i32 = arith.constant 0 : i32
    %c0_i32_0 = arith.constant 0 : i32
    return %c0_i32 : i32
  }
  func.func @transform_1(%arg0: i32) -> (i32, i32) {
    %c0_i32 = arith.constant 0 : i32
    %c0_i32_0 = arith.constant 0 : i32
    %c0_i32_1 = arith.constant 0 : i32
    return %c0_i32, %c0_i32_0 : i32, i32
  }
  func.func @transform_2(%arg0: i32) -> (i32, i32, i32) {
    %c0_i32 = arith.constant 0 : i32
    %c0_i32_0 = arith.constant 0 : i32
    %c0_i32_1 = arith.constant 0 : i32
    return %arg0, %c0_i32, %c0_i32_0 : i32, i32, i32
  }
  func.func @transform_3(%arg0: i32) -> (i32, i32) {
    %c0_i32 = arith.constant 0 : i32
    %c0_i32_0 = arith.constant 0 : i32
    return %arg0, %c0_i32 : i32, i32
  }
  func.func @transform_4(%arg0: i32) -> (i32, i32) {
    %c0_i32 = arith.constant 0 : i32
    %c0_i32_0 = arith.constant 0 : i32
    return %arg0, %c0_i32 : i32, i32
  }
}

</mosaic_0001>

<llo_original>
// kernel: tpu_custom_call.1
$region0: #{tpu_custom_call.1}
  #allocation0 [shape = 'u32[]', space=smem, size = 0x4, offset = 0x4, fixed_abs, tag = 'smem constant byte address 0x4 - core index']
  #allocation1 [shape = 'u32[72,128]{1,0:T(1,128)}', space=vmem, size = 0x9000, scoped, tag = 'internal scratch']
  #allocation2 [shape = 'f32[1]{0:T(128)S(6)}', space=smem, size = 0x200, scoped, tag = 'scoped memory for tpu_custom_call.1']
  %s0 = inlined_call_operand.<no memory space> [shape: f32[1], index: 0, kind: input, shape index: {}]
  %s1 = inlined_call_operand.vmem [shape: f32[4,1], index: 1, kind: input, shape index: {}]
  %s2 = inlined_call_operand.hbm [shape: f32[2,4,256], index: 2, kind: input, shape index: {}]
  %s3 = inlined_call_operand.hbm [shape: f32[2,4], index: 3, kind: output, shape index: {0}]
  %s4 = inlined_call_operand.hbm [shape: f32[2,256], index: 4, kind: output, shape index: {1}]
  %5 = xla_tuple %s3, %s4
  %s6 = sld [smem:[#allocation0]]
  $region34: #{tpu_custom_call.1} parent=0
    _
  %s8 = ssub.s32 1, %s6
  %s9 = scalar_select 0, %s8, %s6
  %10 = sst [smem:[#allocation2]] %s0
  $region1: #{tpu_custom_call.1} parent=0
    #allocation3 [shape = 'u8[8192]{0}', space=vmem, size = 0x2000, scoped, tag = 'input window, operand 2, single buffered']
    #allocation4 [shape = 's32[1]{0}', space=sflag, size = 0x4, scoped, tag = 'scoped memory for tpu_custom_call.1']
    #allocation5 [shape = 's32[1]{0}', space=sflag, size = 0x4, scoped, tag = 'scoped memory for tpu_custom_call.1']
    #allocation6 [shape = 'u8[1024]{0}', space=vmem, size = 0x400, scoped, tag = 'output window, operand 0, single buffered']
    #allocation7 [shape = 'u8[2048]{0}', space=vmem, size = 0x800, scoped, tag = 'output window, operand 1, single buffered']
    #allocation8 [shape = 's32[1]{0}', space=sflag, size = 0x4, scoped, tag = 'scoped memory for tpu_custom_call.1']
    %11 = vsyncpa [#allocation4], 0
    %12 = vsyncpa [#allocation5], 0
    %13 = vsyncpa [#allocation8], 0
    // Predicated region
    $region2: #{tpu_custom_call.1} parent=1 // pred_check
      _
    $region3: #{tpu_custom_call.1} parent=1 // pred_check_branch
      %15 = sbr.rel (0) target = $region5
    $region4: #{tpu_custom_call.1} parent=1 // pred_region
      _
    $region5: #{tpu_custom_call.1} parent=1 // pred_fallthru
      _
    // Predicated region
    $region6: #{tpu_custom_call.1} parent=1 // pred_check
      _
    $region7: #{tpu_custom_call.1} parent=1 // pred_check_branch
      %17 = sbr.rel (0) target = $region9
    $region8: #{tpu_custom_call.1} parent=1 // pred_region
      _
    $region9: #{tpu_custom_call.1} parent=1 // pred_fallthru
      _
    // Predicated region
    $region10: #{tpu_custom_call.1} parent=1 // pred_check
      _
    $region11: #{tpu_custom_call.1} parent=1 // pred_check_branch
      %19 = sbr.rel (0) target = $region13
    $region12: #{tpu_custom_call.1} parent=1 // pred_region
      %21 = vsyncadd [#allocation4], 0
      %s22 = sshll.u32 %s2, 4
      %s23 = int_to_ptr.hbm [resolvable:$true] %s22
      %s24 = sshll.u32 [#allocation3], 4
      %s25 = int_to_ptr.vmem [resolvable:$true] %s24
      %30 = dma.hbm_to_vmem [thread:$0]  %s23, 256, %s25, [#allocation4], 128, 128, 8
    $region13: #{tpu_custom_call.1} parent=1 // pred_fallthru
      _
    // Predicated region
    $region14: #{tpu_custom_call.1} parent=1 // pred_check
      _
    $region15: #{tpu_custom_call.1} parent=1 // pred_check_branch
      %32 = sbr.rel (0) target = $region17
    $region16: #{tpu_custom_call.1} parent=1 // pred_region
      %34 = dma.done [#allocation4], 256
    $region17: #{tpu_custom_call.1} parent=1 // pred_fallthru
      _
    %v35 = vld [vmem:[#allocation3] sm:$0xff]
    %v36 = vld [vmem:[#allocation3 + $0x8] sm:$0xff]
    %v37 = vld [vmem:[%s1] sm:$0xf]
    %39 = vset.pattern.permute.xlu0 0
    %40 = vperm.xlu0 %39, %v37
    %v41 = vpop.permute.xlu0 %40
    %v43 = vunpack.c.l.s4 839922192
    %v44 = vunpack.c.0.s8 %v43
    %v45 = vperm.slane %v41, %v44
    %v47 = vmul.f32 %v35, %v45
    %v48 = vmul.f32 %v36, %v45
    %51 = vst [vmem:[#allocation1] ss:$2 sm:$0xff] %v47
    %v52 = vld.sshfl [vmem:[#allocation1] sm:$0xff pattern:$0x75316420]
    %v53 = vld.sshfl [vmem:[#allocation1 + $0x8] sm:$0xff pattern:$0x75316420]
    %s54 = scalar_lea.vmem [#allocation1], 16
    %55 = vst [vmem:[%s54] ss:$2 sm:$0xff] %v48
    %v56 = vld.sshfl [vmem:[#allocation1 + $0x10] sm:$0xff pattern:$0x75316420]
    %v57 = vld.sshfl [vmem:[#allocation1 + $0x18] sm:$0xff pattern:$0x75316420]
    %vm62 = vcmask 1043456
    %v63 = vsel %vm62, %v52, 0.0
    %v64 = vrot.slane %v63, 4
    %v65 = vadd.f32 %v63, %v64
    %v66 = vrot.slane %v65, 2
    %v67 = vadd.f32 %v65, %v66
    %v68 = vrot.slane %v67, 1
    %v69 = vadd.f32 %v67, %v68
    %v70 = vsel %vm62, %v53, 0.0
    %v71 = vrot.slane %v70, 4
    %v72 = vadd.f32 %v70, %v71
    %v73 = vrot.slane %v72, 2
    %v74 = vadd.f32 %v72, %v73
    %v75 = vrot.slane %v74, 1
    %v76 = vadd.f32 %v74, %v75
    %v77 = vsel %vm62, %v56, 0.0
    %v78 = vrot.slane %v77, 4
    %v79 = vadd.f32 %v77, %v78
    %v80 = vrot.slane %v79, 2
    %v81 = vadd.f32 %v79, %v80
    %v82 = vrot.slane %v81, 1
    %v83 = vadd.f32 %v81, %v82
    %v84 = vsel %vm62, %v57, 0.0
    %v85 = vrot.slane %v84, 4
    %v86 = vadd.f32 %v84, %v85
    %v87 = vrot.slane %v86, 2
    %v88 = vadd.f32 %v86, %v87
    %v89 = vrot.slane %v88, 1
    %v90 = vadd.f32 %v88, %v89
    %s91 = sld [smem:[#allocation2]]
    %v92 = vstv %s91
    %v93 = vadd.f32 %v69, %v92
    %v94 = vadd.f32 %v76, %v92
    %v95 = vadd.f32 %v83, %v92
    %v96 = vadd.f32 %v90, %v92
    %vm101 = vcmask 1041409
    %v102 = vsel %vm101, %v95, %v93
    %v103 = vsel %vm101, %v96, %v94
    %vm106 = vcmask 1041408
    %v107 = vsel %vm106, %v102, -inf
    %v108 = vsel %vm106, %v103, -inf
    %v109 = vmax.f32 %v107, %v108
    %110 = vmax.xlane.f32.xlu0 %v109
    %v111 = vpop.xlane.xlu0 %110
    %v113 = vrot.slane %v111, 1
    %v116 = vsub.f32 %v93, %v111
    %v117 = vsub.f32 %v94, %v111
    %v118 = vsub.f32 %v95, %v113
    %v119 = vsub.f32 %v96, %v113
    %v120 = vmul.f32 %v116, 1.442695
    %v121 = vpow.pop %v120
    %v122 = vmul.f32 %v117, 1.442695
    %v123 = vpow.pop %v122
    %v124 = vmul.f32 %v118, 1.442695
    %v125 = vpow.pop %v124
    %v126 = vmul.f32 %v119, 1.442695
    %v127 = vpow.pop %v126
    %v132 = vrot.slane %v125, 7
    %v133 = vsel %vm101, %v132, %v121
    %v134 = vrot.slane %v127, 7
    %v135 = vsel %vm101, %v134, %v123
    %v138 = vsel %vm106, %v133, 0.0
    %v139 = vsel %vm106, %v135, 0.0
    %v140 = vadd.f32 %v138, %v139
    %141 = vadd.xlane.f32.xlu0 %v140
    %v142 = vpop.xlane.xlu0 %141
    %v143 = vrcp.pop %v142
    %v144 = vmul.f32 %v142, %v143
    %v145 = vsub.f32 2.0, %v144
    %v146 = vmul.f32 %v143, %v145
    %v148 = vrot.slane %v146, 1
    %v151 = vmul.f32 %v121, %v146
    %v152 = vmul.f32 %v123, %v146
    %v153 = vmul.f32 %v125, %v148
    %v154 = vmul.f32 %v127, %v148
    %v159 = vrot.slane %v152, 6
    %v160 = vrot.slane %v154, 6
    %v161 = vsel %vm106, %v151, %v159
    %v162 = vsel %vm106, %v153, %v160
    %vm163 = vcmask 1044484
    %v164 = vsel %vm163, %v161, %v161
    %vm165 = vcmask 1046534
    %v166 = vsel %vm165, %v161, %v164
    %v167 = vrot.slane %v162, 7
    %v168 = vsel %vm101, %v167, %v166
    %vm169 = vcmask 1043459
    %v170 = vsel %vm169, %v167, %v168
    %vm171 = vcmask 1045509
    %v172 = vsel %vm171, %v167, %v170
    %vm173 = vcmask 1047559
    %v174 = vsel %vm173, %v167, %v172
    %176 = vst [vmem:[#allocation7] sm:$0xf] %v174
    %v177 = vperm.slane %v151, 0
    %v178 = vperm.slane %v152, 0
    %v179 = vperm.slane %v153, 0
    %v180 = vperm.slane %v154, 0
    %v185 = vrot.slane %v178, 4
    %v186 = vrot.slane %v180, 4
    %v187 = vsel %vm62, %v177, %v185
    %v188 = vsel %vm62, %v179, %v186
    %v191 = vmul.f32 %v35, %v187
    %v192 = vmul.f32 %v36, %v188
    %195 = vst [vmem:[#allocation1] ss:$2 sm:$0xff] %v191
    %v196 = vld.sshfl [vmem:[#allocation1] sm:$0xff pattern:$0x75316420]
    %v197 = vld.sshfl [vmem:[#allocation1 + $0x8] sm:$0xff pattern:$0x75316420]
    %s198 = scalar_lea.vmem [#allocation1], 16
    %199 = vst [vmem:[%s198] ss:$2 sm:$0xff] %v192
    %v200 = vld.sshfl [vmem:[#allocation1 + $0x10] sm:$0xff pattern:$0x75316420]
    %v201 = vld.sshfl [vmem:[#allocation1 + $0x18] sm:$0xff pattern:$0x75316420]
    %v206 = vsel %vm62, %v196, 0.0
    %v207 = vsel %vm62, %v197, 0.0
    %v208 = vadd.f32 %v206, %v207
    %209 = vadd.xlane.f32.xlu0 %v208
    %v210 = vpop.xlane.xlu0 %209
    %v211 = vsel %vm62, %v200, 0.0
    %v212 = vsel %vm62, %v201, 0.0
    %v213 = vadd.f32 %v211, %v212
    %214 = vadd.xlane.f32.xlu0 %v213
    %v215 = vpop.xlane.xlu0 %214
    %v218 = vlaneseq
    %v219 = vand.u32 %v218, 127
    %v220 = vperm.slane %v210, %v219
    %v221 = vperm.slane %v215, %v219
    %v222 = vsel %vm101, %v221, %v220
    %vm224 = vcmask 25600
    %225 = vst.msk [vmem:[#allocation6] sm:$0x3] %vm224, %v222
    // Predicated region
    $region18: #{tpu_custom_call.1} parent=1 // pred_check
      _
    $region19: #{tpu_custom_call.1} parent=1 // pred_check_branch
      %227 = sbr.rel (0) target = $region21
    $region20: #{tpu_custom_call.1} parent=1 // pred_region
      %229 = vsyncadd [#allocation5], 0
      %s231 = sshll.u32 [#allocation6], 4
      %s232 = int_to_ptr.vmem [resolvable:$true] %s231
      %s233 = sshll.u32 %s3, 4
      %s234 = int_to_ptr.hbm [resolvable:$true] %s233
      %236 = dma.vmem_to_hbm [thread:$0]  %s232, 32, %s234, [#allocation5]
    $region21: #{tpu_custom_call.1} parent=1 // pred_fallthru
      _
    // Predicated region
    $region22: #{tpu_custom_call.1} parent=1 // pred_check
      _
    $region23: #{tpu_custom_call.1} parent=1 // pred_check_branch
      %238 = sbr.rel (0) target = $region25
    $region24: #{tpu_custom_call.1} parent=1 // pred_region
      %240 = vsyncadd [#allocation8], 0
      %s242 = sshll.u32 [#allocation7], 4
      %s243 = int_to_ptr.vmem [resolvable:$true] %s242
      %s244 = sshll.u32 %s4, 4
      %s245 = int_to_ptr.hbm [resolvable:$true] %s244
      %247 = dma.vmem_to_hbm [thread:$0]  %s243, 64, %s245, [#allocation8]
    $region25: #{tpu_custom_call.1} parent=1 // pred_fallthru
      _
    // Predicated region
    $region26: #{tpu_custom_call.1} parent=1 // pred_check
      _
    $region27: #{tpu_custom_call.1} parent=1 // pred_check_branch
      %249 = sbr.rel (0) target = $region29
    $region28: #{tpu_custom_call.1} parent=1 // pred_region
      %251 = dma.done [#allocation5], 32
    $region29: #{tpu_custom_call.1} parent=1 // pred_fallthru
      _
    // Predicated region
    $region30: #{tpu_custom_call.1} parent=1 // pred_check
      _
    $region31: #{tpu_custom_call.1} parent=1 // pred_check_branch
      %253 = sbr.rel (0) target = $region33
    $region32: #{tpu_custom_call.1} parent=1 // pred_region
      %255 = dma.done [#allocation8], 64
    $region33: #{tpu_custom_call.1} parent=1 // pred_fallthru
      _
    %256 = vsyncpa [#allocation4], 1
    %257 = vsyncpa [#allocation5], 1
    %258 = vsyncpa [#allocation8], 1

</llo_original>
